<compile_context>
chip_gen: v7x
topology: tpu7x:2x2x1
jax: 0.10.0
libtpu: 0.0.40
codegen_flags: <defaults>
</compile_context>

<pallas_src>
import jax
import jax.numpy as jnp
from jax.experimental import pallas as pl
from jax.experimental.pallas import tpu as pltpu

LANE = 128
SUBLANE = 8


def _round_up(x, m):
    return (x + m - 1) // m * m


# ---------------------------------------------------------------------------
# Output container (JAX analogue of BaseTextOutput)
# ---------------------------------------------------------------------------
class BaseTextOutput:
    def __init__(self, encoder_hidden_states, pooled_output=None, attention_mask=None):
        self.encoder_hidden_states = encoder_hidden_states
        self.pooled_output = pooled_output
        self.attention_mask = attention_mask

    def __len__(self):
        return self.encoder_hidden_states.shape[0]


# ---------------------------------------------------------------------------
# Kernel 1: hidden = gelu(x @ W1 + b1) over a (TM, Hp) row tile.
#   x_ref: (TM, Hp) bf16, w1_ref: (Hp, Hp) bf16 (resident), b1_ref: (1, Hp) f32
# ---------------------------------------------------------------------------
def _hidden_kernel(x_ref, w1_ref, b1_ref, o_ref):
    h = jnp.dot(x_ref[...], w1_ref[...], preferred_element_type=jnp.float32)
    h = h + b1_ref[...]                       # broadcast (1,Hp) -> (TM,Hp)
    h = jax.nn.gelu(h, approximate=True)      # f32 elementwise (tanh -> EUP slot)
    o_ref[...] = h.astype(o_ref.dtype)


# ---------------------------------------------------------------------------
# Kernel 2: pooled = last_rows @ Wp + bp (one small lane-dense matmul).
#   x_ref: (Bp, Hp) bf16, wp_ref: (Hp, Hp) bf16, bp_ref: (1, Hp) f32
# ---------------------------------------------------------------------------
def _pooled_kernel(x_ref, wp_ref, bp_ref, o_ref):
    p = jnp.dot(x_ref[...], wp_ref[...], preferred_element_type=jnp.float32)
    o_ref[...] = (p + bp_ref[...]).astype(o_ref.dtype)


# ---------------------------------------------------------------------------
# Wrapper: lane-dense padding + M-tiled grid + pooled gather
# ---------------------------------------------------------------------------
def text_encoder_pallas(x_emb, w1, b1, wp, bp, last_idx):
    """x_emb: [B,S,H] f32 embeddings; last_idx: [B] int32 (last real token).
    Returns (hidden [B,S,H] f32, pooled [B,H] f32)."""
    B, S, H = x_emb.shape
    M = B * S
    Hp = _round_up(H, LANE)

    def pad_last(a):
        if a.shape[-1] == Hp:
            return a
        pads = [(0, 0)] * (a.ndim - 1) + [(0, Hp - a.shape[-1])]
        return jnp.pad(a, pads)

    # Weights padded to lane-dense (Hp, Hp); extra cols/rows are zero so the
    # padded hidden columns come out exactly gelu(0) = 0 and are sliced off.
    w1_p = pad_last(jnp.pad(w1, ((0, Hp - H), (0, 0)))).astype(jnp.bfloat16)
    wp_p = pad_last(jnp.pad(wp, ((0, Hp - H), (0, 0)))).astype(jnp.bfloat16)
    b1_p = pad_last(b1).astype(jnp.float32)
    bp_p = pad_last(bp).astype(jnp.float32)

    # Collapse (B,S) -> M token rows; bf16 operands for the MXU.
    x2 = pad_last(x_emb.reshape(M, H)).astype(jnp.bfloat16)

    # M tiling: single invocation when small, 256-row tiles when large.
    if M <= 512:
        TM = _round_up(M, SUBLANE)
    else:
        TM = 256
    Mp = _round_up(M, TM)
    if Mp != M:
        x2 = jnp.pad(x2, ((0, Mp - M), (0, 0)))
    grid_m = Mp // TM

    # TODO(synk): for real encoder sizes (H=768..2048, S=77+) set
    # vmem_limit_bytes from the tile budget (v7x has 64 MiB VMEM per TC).
    hidden_pad = pl.pallas_call(
        _hidden_kernel,
        out_shape=jax.ShapeDtypeStruct((Mp, Hp), jnp.float32),
        grid_spec=pltpu.PrefetchScalarGridSpec(
            num_scalar_prefetch=0,
            grid=(grid_m,),
            in_specs=[
                pl.BlockSpec((TM, Hp), lambda m: (m, 0)),   # token-row tile
                pl.BlockSpec((Hp, Hp), lambda m: (0, 0)),   # W1 (resident)
                pl.BlockSpec((1, Hp), lambda m: (0, 0)),    # b1 (resident)
            ],
            out_specs=pl.BlockSpec((TM, Hp), lambda m: (m, 0)),
        ),
        compiler_params=pltpu.CompilerParams(
            dimension_semantics=("parallel",)),
    )(x2, w1_p, b1_p)

    hidden = hidden_pad[:M, :H].reshape(B, S, H)

    # EOS-style pooling: gather last real token row per sequence (plain-JAX
    # glue gather), then one lane-dense matmul in Pallas.
    rows = jnp.arange(B, dtype=jnp.int32) * S + last_idx
    last = jnp.take(hidden_pad, rows, axis=0)              # (B, Hp) f32
    Bp = _round_up(B, SUBLANE)
    if Bp != B:
        last = jnp.pad(last, ((0, Bp - B), (0, 0)))

    pooled_pad = pl.pallas_call(
        _pooled_kernel,
        out_shape=jax.ShapeDtypeStruct((Bp, Hp), jnp.float32),
    )(last.astype(jnp.bfloat16), wp_p, bp_p)
    pooled = pooled_pad[:B, :H]

    return hidden, pooled


# ---------------------------------------------------------------------------
# Concrete BaseTextModel (JAX/Pallas version)
# ---------------------------------------------------------------------------
class BaseTextModelPallas:
    def __init__(self, vocab_size=256, max_length=8, hidden=32, seed=0):
        self.vocab_size = vocab_size
        self.max_length = max_length
        self.hidden = hidden

        key = jax.random.PRNGKey(seed)
        k_tok, k_pos, k_w1, k_wp = jax.random.split(key, 4)
        scale = 1.0 / jnp.sqrt(hidden)
        self.tok_emb = jax.random.normal(k_tok, (vocab_size, hidden), jnp.float32) * scale
        self.pos_emb = jax.random.normal(k_pos, (max_length, hidden), jnp.float32) * scale
        self.w1 = jax.random.normal(k_w1, (hidden, hidden), jnp.float32) * scale
        self.b1 = jnp.zeros((1, hidden), jnp.float32)
        self.wp = jax.random.normal(k_wp, (hidden, hidden), jnp.float32) * scale
        self.bp = jnp.zeros((1, hidden), jnp.float32)

    # TODO(synk): host-side byte-level tokenizer stands in for the HF tokenizer glue.
    def tokenize(self, texts):
        ids, mask = [], []
        for t in texts:
            toks = [ord(c) % (self.vocab_size - 1) + 1 for c in t][: self.max_length]
            n = len(toks)
            ids.append(toks + [0] * (self.max_length - n))
            mask.append([1] * n + [0] * (self.max_length - n))
        return (jnp.asarray(ids, jnp.int32), jnp.asarray(mask, jnp.int32))

    def get_hidden_states(self, tokens):
        ids, mask = tokens
        # embedding lookup is glue (plain JAX gather); matmuls run in Pallas
        x = jnp.take(self.tok_emb, ids, axis=0) + self.pos_emb[None, :, :]   # [B,S,H]
        last_idx = jnp.maximum(jnp.sum(mask, axis=1) - 1, 0).astype(jnp.int32)
        hidden, pooled = text_encoder_pallas(x, self.w1, self.b1, self.wp, self.bp, last_idx)
        return hidden, pooled

    def forward(self, prompts):
        tokens = self.tokenize(prompts)
        encoder_hidden_states, pooled_output = self.get_hidden_states(tokens)
        return BaseTextOutput(encoder_hidden_states, pooled_output,
                              attention_mask=tokens[1])

    __call__ = forward

    # TODO(synk): gradient checkpointing / save_pretrained / fp8-prep /
    # from_pretrained are framework plumbing with no Pallas equivalent.


if __name__ == "__main__":
    model = BaseTextModelPallas(vocab_size=256, max_length=8, hidden=32, seed=0)
    prompts = ["a photo of a cat", "hello tpu"]   # batch=2, seq=8, hidden=32

    out = model(prompts)
    jax.block_until_ready(out.encoder_hidden_states)
    jax.block_until_ready(out.pooled_output)

    # plain-JAX reference (f32; kernel uses bf16 matmul operands -> loose atol)
    ids, mask = model.tokenize(prompts)
    x = jnp.take(model.tok_emb, ids, axis=0) + model.pos_emb[None, :, :]
    h_ref = jnp.einsum("bsh,hk->bsk", x, model.w1) + model.b1[None]
    h_ref = jax.nn.gelu(h_ref, approximate=True)
    last_idx = jnp.maximum(jnp.sum(mask, axis=1) - 1, 0)
    last_ref = h_ref[jnp.arange(len(prompts)), last_idx]
    p_ref = last_ref @ model.wp + model.bp

    assert out.encoder_hidden_states.shape == (2, 8, 32)
    assert out.pooled_output.shape == (2, 32)
    assert out.attention_mask.shape == (2, 8)
    assert jnp.allclose(out.encoder_hidden_states, h_ref, atol=3e-2), "hidden mismatch"
    assert jnp.allclose(out.pooled_output, p_ref, atol=3e-2), "pooled mismatch"

    print("KERNEL_OK")
</pallas_src>

<mosaic_0001>
module attributes {stable_mosaic.version = 11 : i64} {
  func.func @_hidden_kernel(%arg0: i32, %arg1: memref<16x128xbf16, #tpu.memory_space<vmem>>, %arg2: memref<128x128xbf16, #tpu.memory_space<vmem>>, %arg3: memref<1x128xf32, #tpu.memory_space<vmem>>, %arg4: memref<16x128xf32, #tpu.memory_space<vmem>>) attributes {dimension_semantics = [#tpu.dimension_semantics<parallel>], iteration_bounds = array<i64: 1>, scalar_prefetch = 0 : i64, scratch_operands = 0 : i64, tpu.core_type = #tpu.core_type<tc>, window_params = [{transform_indices = @transform_0, window_bounds = array<i64: 16, 128>}, {pipeline_mode = #tpu.pipeline_mode<synchronous>, transform_indices = @transform_1, window_bounds = array<i64: 128, 128>}, {pipeline_mode = #tpu.pipeline_mode<synchronous>, transform_indices = @transform_2, window_bounds = array<i64: 1, 128>}, {transform_indices = @transform_3, window_bounds = array<i64: 16, 128>}]} {
    %c0 = arith.constant 0 : index
    %c0_0 = arith.constant 0 : index
    %0 = vector.load %arg1[%c0, %c0_0] : memref<16x128xbf16, #tpu.memory_space<vmem>>, vector<16x128xbf16>
    %c0_1 = arith.constant 0 : index
    %c0_2 = arith.constant 0 : index
    %1 = vector.load %arg2[%c0_1, %c0_2] : memref<128x128xbf16, #tpu.memory_space<vmem>>, vector<128x128xbf16>
    %cst = arith.constant dense<0.000000e+00> : vector<16x128xf32>
    %2 = tpu.matmul %0, %1, %cst {dimension_numbers = #tpu.dot_dimension_numbers<[1], [0], [0], [1], [0, 0, 1, 1], [], []>} : vector<16x128xbf16>, vector<128x128xbf16>, vector<16x128xf32> -> vector<16x128xf32>
    %c0_3 = arith.constant 0 : index
    %c0_4 = arith.constant 0 : index
    %3 = vector.load %arg3[%c0_3, %c0_4] : memref<1x128xf32, #tpu.memory_space<vmem>>, vector<1x128xf32>
    %4 = vector.broadcast %3 : vector<1x128xf32> to vector<16x128xf32>
    %5 = arith.addf %2, %4 : vector<16x128xf32>
    %6 = arith.mulf %5, %5 : vector<16x128xf32>
    %7 = arith.mulf %5, %6 : vector<16x128xf32>
    %cst_5 = arith.constant 4.471500e-02 : f32
    %8 = vector.broadcast %cst_5 : f32 to vector<16x128xf32>
    %9 = arith.mulf %8, %7 : vector<16x128xf32>
    %10 = arith.addf %5, %9 : vector<16x128xf32>
    %cst_6 = arith.constant 0.797884583 : f32
    %11 = vector.broadcast %cst_6 : f32 to vector<16x128xf32>
    %12 = arith.mulf %11, %10 : vector<16x128xf32>
    %13 = math.tanh %12 : vector<16x128xf32>
    %cst_7 = arith.constant 1.000000e+00 : f32
    %14 = vector.broadcast %cst_7 : f32 to vector<16x128xf32>
    %15 = arith.addf %14, %13 : vector<16x128xf32>
    %cst_8 = arith.constant 5.000000e-01 : f32
    %16 = vector.broadcast %cst_8 : f32 to vector<16x128xf32>
    %17 = arith.mulf %16, %15 : vector<16x128xf32>
    %18 = arith.mulf %5, %17 : vector<16x128xf32>
    %c0_9 = arith.constant 0 : index
    %c0_10 = arith.constant 0 : index
    %19 = vector.load %arg4[%c0_9, %c0_10] : memref<16x128xf32, #tpu.memory_space<vmem>>, vector<16x128xf32>
    tpu.vector_store %arg4[%c0_9, %c0_10], %18 {strides = array<i32>} : memref<16x128xf32, #tpu.memory_space<vmem>>, vector<16x128xf32>,
    return
  }
  func.func @transform_0(%arg0: i32) -> (i32, i32) {
    %c0_i32 = arith.constant 0 : i32
    %c0_i32_0 = arith.constant 0 : i32
    return %arg0, %c0_i32 : i32, i32
  }
  func.func @transform_1(%arg0: i32) -> (i32, i32) {
    %c0_i32 = arith.constant 0 : i32
    %c0_i32_0 = arith.constant 0 : i32
    %c0_i32_1 = arith.constant 0 : i32
    return %c0_i32, %c0_i32_0 : i32, i32
  }
  func.func @transform_2(%arg0: i32) -> (i32, i32) {
    %c0_i32 = arith.constant 0 : i32
    %c0_i32_0 = arith.constant 0 : i32
    %c0_i32_1 = arith.constant 0 : i32
    return %c0_i32, %c0_i32_0 : i32, i32
  }
  func.func @transform_3(%arg0: i32) -> (i32, i32) {
    %c0_i32 = arith.constant 0 : i32
    %c0_i32_0 = arith.constant 0 : i32
    return %arg0, %c0_i32 : i32, i32
  }
}

</mosaic_0001>

<llo_original>
// kernel: tpu_custom_call.1
$region0: #{tpu_custom_call.1}
  #allocation0 [shape = 'u32[]', space=smem, size = 0x4, offset = 0x4, fixed_abs, tag = 'smem constant byte address 0x4 - core index']
  #allocation1 [shape = 'u32[144,128]{1,0:T(1,128)}', space=vmem, size = 0x12000, scoped, tag = 'internal scratch']
  %s0 = inlined_call_operand.hbm [shape: bf16[16,128], index: 0, kind: input, shape index: {}]
  %s1 = inlined_call_operand.hbm [shape: bf16[128,128], index: 1, kind: input, shape index: {}]
  %s2 = inlined_call_operand.vmem [shape: f32[1,128], index: 2, kind: input, shape index: {}]
  %s3 = inlined_call_operand.hbm [shape: f32[16,128], index: 3, kind: output, shape index: {}]
  %s4 = sld [smem:[#allocation0]]
  $region30: #{tpu_custom_call.1} parent=0
    _
  %s6 = ssub.s32 1, %s4
  %s7 = scalar_select 0, %s6, %s4
  $region1: #{tpu_custom_call.1} parent=0
    #allocation2 [shape = 'u8[4096]{0}', space=vmem, size = 0x1000, scoped, tag = 'input window, operand 0, single buffered']
    #allocation3 [shape = 's32[1]{0}', space=sflag, size = 0x4, scoped, tag = 'scoped memory for tpu_custom_call.1']
    #allocation4 [shape = 's32[1]{0}', space=sflag, size = 0x4, scoped, tag = 'scoped memory for tpu_custom_call.1']
    #allocation5 [shape = 'u8[32768]{0}', space=vmem, size = 0x8000, scoped, tag = 'input window, operand 1, single buffered']
    #allocation6 [shape = 's32[1]{0}', space=sflag, size = 0x4, scoped, tag = 'scoped memory for tpu_custom_call.1']
    #allocation7 [shape = 'u8[8192]{0}', space=vmem, size = 0x2000, scoped, tag = 'output window, operand 0, single buffered']
    %8 = vsyncpa [#allocation3], 0
    %9 = vsyncpa [#allocation6], 0
    %10 = vsyncpa [#allocation4], 0
    // Predicated region
    $region2: #{tpu_custom_call.1} parent=1 // pred_check
      _
    $region3: #{tpu_custom_call.1} parent=1 // pred_check_branch
      %12 = sbr.rel (0) target = $region5
    $region4: #{tpu_custom_call.1} parent=1 // pred_region
      %s14 = ssub.s32 128, 128
      %15 = vsyncadd [#allocation3], %s14
      %s16 = sshll.u32 [#allocation2], 4
      %s17 = int_to_ptr.vmem [resolvable:$true] %s16
      %22 = dma.hbm_to_vmem [thread:$0]  %s0, 128, %s17, [#allocation3], 64, 64, 4
    $region5: #{tpu_custom_call.1} parent=1 // pred_fallthru
      _
    // Predicated region
    $region6: #{tpu_custom_call.1} parent=1 // pred_check
      _
    $region7: #{tpu_custom_call.1} parent=1 // pred_check_branch
      %24 = sbr.rel (0) target = $region9
    $region8: #{tpu_custom_call.1} parent=1 // pred_region
      %s26 = ssub.s32 1024, 1024
      %27 = vsyncadd [#allocation6], %s26
      %s28 = sshll.u32 [#allocation5], 4
      %s29 = int_to_ptr.vmem [resolvable:$true] %s28
      %34 = dma.hbm_to_vmem [thread:$0]  %s1, 1024, %s29, [#allocation6], 64, 64, 4
    $region9: #{tpu_custom_call.1} parent=1 // pred_fallthru
      _
    // Predicated region
    $region10: #{tpu_custom_call.1} parent=1 // pred_check
      _
    $region11: #{tpu_custom_call.1} parent=1 // pred_check_branch
      %36 = sbr.rel (0) target = $region13
    $region12: #{tpu_custom_call.1} parent=1 // pred_region
      _
    $region13: #{tpu_custom_call.1} parent=1 // pred_fallthru
      _
    // Predicated region
    $region14: #{tpu_custom_call.1} parent=1 // pred_check
      _
    $region15: #{tpu_custom_call.1} parent=1 // pred_check_branch
      %38 = sbr.rel (0) target = $region17
    $region16: #{tpu_custom_call.1} parent=1 // pred_region
      %39 = dma.done [#allocation3], 128
    $region17: #{tpu_custom_call.1} parent=1 // pred_fallthru
      _
    // Predicated region
    $region18: #{tpu_custom_call.1} parent=1 // pred_check
      _
    $region19: #{tpu_custom_call.1} parent=1 // pred_check_branch
      %41 = sbr.rel (0) target = $region21
    $region20: #{tpu_custom_call.1} parent=1 // pred_region
      %42 = dma.done [#allocation6], 1024
    $region21: #{tpu_custom_call.1} parent=1 // pred_fallthru
      _
    %v44 = vld [vmem:[#allocation2] sm:$0xf]
    %v45 = vld [vmem:[#allocation2 + $0x4] sm:$0xf]
    %v46 = vld [vmem:[#allocation5] sm:$0xf]
    %v47 = vld [vmem:[#allocation5 + $0x4] sm:$0xf]
    %v48 = vld [vmem:[#allocation5 + $0x8] sm:$0xf]
    %v49 = vld [vmem:[#allocation5 + $0xc] sm:$0xf]
    %v50 = vld [vmem:[#allocation5 + $0x10] sm:$0xf]
    %v51 = vld [vmem:[#allocation5 + $0x14] sm:$0xf]
    %v52 = vld [vmem:[#allocation5 + $0x18] sm:$0xf]
    %v53 = vld [vmem:[#allocation5 + $0x1c] sm:$0xf]
    %v54 = vld [vmem:[#allocation5 + $0x20] sm:$0xf]
    %v55 = vld [vmem:[#allocation5 + $0x24] sm:$0xf]
    %v56 = vld [vmem:[#allocation5 + $0x28] sm:$0xf]
    %v57 = vld [vmem:[#allocation5 + $0x2c] sm:$0xf]
    %v58 = vld [vmem:[#allocation5 + $0x30] sm:$0xf]
    %v59 = vld [vmem:[#allocation5 + $0x34] sm:$0xf]
    %v60 = vld [vmem:[#allocation5 + $0x38] sm:$0xf]
    %v61 = vld [vmem:[#allocation5 + $0x3c] sm:$0xf]
    %v62 = vld [vmem:[%s2] sm:$0x1]
    %v64 = vlaneseq
    %v65 = vshrl.u32 %v64, 7
    %v66 = vsub.s32 0, %v65
    %v67 = vrot.slane %v62, %v66
    %v71 = vunpack.c.l.b16 %v44
    %v72 = vunpack.c.l.b16 %v45
    %v73 = vpack.c.b16 %v72, %v71
    %v91 = vunpack.c.l.b16 %v46
    %v92 = vunpack.c.l.b16 %v47
    %v93 = vunpack.c.l.b16 %v48
    %v94 = vunpack.c.l.b16 %v49
    %v95 = vunpack.c.l.b16 %v50
    %v96 = vunpack.c.l.b16 %v51
    %v97 = vunpack.c.l.b16 %v52
    %v98 = vunpack.c.l.b16 %v53
    %v99 = vunpack.c.l.b16 %v54
    %v100 = vunpack.c.l.b16 %v55
    %v101 = vunpack.c.l.b16 %v56
    %v102 = vunpack.c.l.b16 %v57
    %v103 = vunpack.c.l.b16 %v58
    %v104 = vunpack.c.l.b16 %v59
    %v105 = vunpack.c.l.b16 %v60
    %v106 = vunpack.c.l.b16 %v61
    %v107 = vpack.c.b16 %v92, %v91
    %v108 = vpack.c.b16 %v94, %v93
    %v109 = vpack.c.b16 %v96, %v95
    %v110 = vpack.c.b16 %v98, %v97
    %v111 = vpack.c.b16 %v100, %v99
    %v112 = vpack.c.b16 %v102, %v101
    %v113 = vpack.c.b16 %v104, %v103
    %v114 = vpack.c.b16 %v106, %v105
    %123 = vmatprep.subr.bf16.mxu0 0
    %124 = vmatpush1.bf16.msra.mxu0 %v107
    %125 = vmatprep.subr.bf16.mxu0 0
    %126 = vmatpush1.bf16.msra.mxu0 %v108
    %127 = vmatprep.subr.bf16.mxu0 0
    %128 = vmatpush1.bf16.msra.mxu0 %v109
    %129 = vmatprep.subr.bf16.mxu0 0
    %130 = vmatpush1.bf16.msra.mxu0 %v110
    %131 = vmatprep.subr.bf16.mxu0 0
    %132 = vmatpush1.bf16.msra.mxu0 %v111
    %133 = vmatprep.subr.bf16.mxu0 0
    %134 = vmatpush1.bf16.msra.mxu0 %v112
    %135 = vmatprep.subr.bf16.mxu0 0
    %136 = vmatpush1.bf16.msra.mxu0 %v113
    %137 = vmatprep.subr.bf16.mxu0 0
    %138 = vmatpush1.bf16.msra.mxu0 %v114
    %139 = vmatprep.subr.bf16.mxu0 0
    %140 = vmatpush1.bf16.msra.mxu0 0
    %141 = vmatprep.subr.bf16.mxu0 0
    %142 = vmatpush1.bf16.msra.mxu0 0
    %143 = vmatprep.subr.bf16.mxu0 0
    %144 = vmatpush1.bf16.msra.mxu0 0
    %145 = vmatprep.subr.bf16.mxu0 0
    %146 = vmatpush1.bf16.msra.mxu0 0
    %147 = vmatprep.subr.bf16.mxu0 0
    %148 = vmatpush1.bf16.msra.mxu0 0
    %149 = vmatprep.subr.bf16.mxu0 0
    %150 = vmatpush1.bf16.msra.mxu0 0
    %151 = vmatprep.subr.bf16.mxu0 0
    %152 = vmatpush1.bf16.msra.mxu0 0
    %153 = vmatprep.subr.bf16.mxu0 0
    %154 = vmatpush1.bf16.msra.mxu0 0
    %155 = vmatprep.mubr.bf16.mxu0 0
    %156 = vmatmul.mubr.bf16.gmra.mrb[0].mxu0 %v73
    %v157 = vpop.f32.mrb[0].mxu0
    %v158 = vadd.f32 %v67, %v157
    %v159 = vpop.f32.mrb[0].mxu0
    %v160 = vpop.f32.mrb[0].mxu0
    %v161 = vadd.f32 %v67, %v160
    %v162 = vpop.f32.mrb[0].mxu0
    %163 = vdwg.mxu0
    %v164 = vmul.f32 %v158, %v158
    %v165 = vmul.f32 %v161, %v161
    %v166 = vmul.f32 %v158, %v164
    %v167 = vmul.f32 %v161, %v165
    %v168 = vmul.f32 %v166, 0.044715
    %v169 = vmul.f32 %v167, 0.044715
    %v170 = vadd.f32 %v158, %v168
    %v171 = vadd.f32 %v161, %v169
    %v172 = vmul.f32 %v170, 0.7978846
    %v173 = vmul.f32 %v171, 0.7978846
    %v174 = vtanh.pop %v172
    %v175 = vtanh.pop %v173
    %v176 = vadd.f32 %v174, 1.0
    %v177 = vadd.f32 %v175, 1.0
    %v178 = vmul.f32 %v176, 0.5
    %v179 = vmul.f32 %v177, 0.5
    %v180 = vmul.f32 %v158, %v178
    %v181 = vmul.f32 %v161, %v179
    %182 = vst [vmem:[#allocation7] sm:$0xff] %v180
    %183 = vst [vmem:[#allocation7 + $0x8] sm:$0xff] %v181
    // Predicated region
    $region22: #{tpu_custom_call.1} parent=1 // pred_check
      _
    $region23: #{tpu_custom_call.1} parent=1 // pred_check_branch
      %185 = sbr.rel (0) target = $region25
    $region24: #{tpu_custom_call.1} parent=1 // pred_region
      %s187 = ssub.s32 256, 256
      %188 = vsyncadd [#allocation4], %s187
      %s189 = sshll.u32 [#allocation7], 4
      %s190 = int_to_ptr.vmem [resolvable:$true] %s189
      %195 = dma.vmem_to_hbm [thread:$0]  %s190, 256, %s3, [#allocation4], 128, 128, 8
    $region25: #{tpu_custom_call.1} parent=1 // pred_fallthru
      _
    // Predicated region
    $region26: #{tpu_custom_call.1} parent=1 // pred_check
      _
    $region27: #{tpu_custom_call.1} parent=1 // pred_check_branch
      %197 = sbr.rel (0) target = $region29
    $region28: #{tpu_custom_call.1} parent=1 // pred_region
      %198 = dma.done [#allocation4], 256
    $region29: #{tpu_custom_call.1} parent=1 // pred_fallthru
      _
    %199 = vsyncpa [#allocation3], 1
    %200 = vsyncpa [#allocation6], 1
    %201 = vsyncpa [#allocation4], 1

</llo_original>
